<compile_context>
chip_gen: v5e
topology: v5e:2x2
jax: 0.10.0
libtpu: 0.0.40
codegen_flags: <defaults>
</compile_context>

<pallas_src>
import functools

import jax
import jax.numpy as jnp
from jax.experimental import pallas as pl
from jax.experimental.pallas import tpu as pltpu

BN_EPS = 1e-5


def _temporal_conv_kernel(x_ref, w_ref, b_ref, o_ref, *,
                          kernel_size, stride, dilation, t_out):
    """One batch element per grid step.

    x_ref: (1, T_pad, V, C_in)   zero-padded along T in the wrapper
    w_ref: (K, C_in, C_out)      BN-folded conv weight
    b_ref: (1, C_out)            BN-folded bias
    o_ref: (1, T_out, V, C_out)
    """
    x = x_ref[0]                                    # (T_pad, V, C_in)
    _, v, c_in = x.shape
    c_out = w_ref.shape[2]

    acc = jnp.zeros((t_out * v, c_out), jnp.float32)
    for k in range(kernel_size):                    # K is small & static -> unrolled
        start = k * dilation
        if stride == 1:
            xk = jax.lax.slice_in_dim(x, start, start + t_out, axis=0)
        else:
            # Select rows start, start+stride, ... via a leading-dim reshape
            # (layout-free) instead of a strided load.
            blk = jax.lax.slice_in_dim(x, start, start + t_out * stride, axis=0)
            xk = blk.reshape(t_out, stride, v, c_in)[:, 0]
        acc = acc + jnp.dot(xk.reshape(t_out * v, c_in), w_ref[k],
                            preferred_element_type=jnp.float32)

    acc = acc + b_ref[...]                          # (1, C_out) broadcast over rows
    o_ref[0] = acc.reshape(t_out, v, c_out).astype(o_ref.dtype)


def temporal_conv(x, weight, bias, bn_params, *, stride=1, dilation=1):
    """TemporalConv forward (eval-mode BN).

    x:       (N, C_in, T, V)  -- PyTorch NCHW layout with H=T, W=V
    weight:  (C_out, C_in, K) -- Conv2d weight (trailing W-kernel dim of 1 dropped)
    bias:    (C_out,)
    bn_params: (gamma, beta, running_mean, running_var), each (C_out,)
    returns: (N, C_out, T_out, V)
    """
    gamma, beta, mean, var = bn_params
    c_out, c_in, k = weight.shape
    n, c_in_x, t, v = x.shape
    assert c_in_x == c_in

    pad = (k + (k - 1) * (dilation - 1) - 1) // 2
    t_out = (t + 2 * pad - dilation * (k - 1) - 1) // stride + 1

    # Fold eval-mode BatchNorm into the conv weight / bias.
    scale = gamma * jax.lax.rsqrt(var + BN_EPS)                  # (C_out,)
    shift = beta - mean * scale                                  # (C_out,)
    w_f = (weight * scale[:, None, None]).transpose(2, 1, 0)     # (K, C_in, C_out)
    b_f = (bias * scale + shift)[None, :]                        # (1, C_out)

    # Channels-last + zero padding along T.  The extra (stride-1) trailing rows
    # only make the strided-selection reshape length-divisible; they are never
    # selected as valid conv inputs.
    x_cl = jnp.transpose(x, (0, 2, 3, 1))                        # (N, T, V, C_in)
    x_cl = jnp.pad(x_cl, ((0, 0), (pad, pad + (stride - 1)), (0, 0), (0, 0)))
    t_pad = x_cl.shape[1]

    kernel = functools.partial(_temporal_conv_kernel, kernel_size=k,
                               stride=stride, dilation=dilation, t_out=t_out)

    y_cl = pl.pallas_call(
        kernel,
        out_shape=jax.ShapeDtypeStruct((n, t_out, v, c_out), x.dtype),
        grid=(n,),
        in_specs=[
            pl.BlockSpec((1, t_pad, v, c_in), lambda i: (i, 0, 0, 0)),
            pl.BlockSpec((k, c_in, c_out), lambda i: (0, 0, 0)),
            pl.BlockSpec((1, c_out), lambda i: (0, 0)),
        ],
        out_specs=pl.BlockSpec((1, t_out, v, c_out), lambda i: (i, 0, 0, 0)),
        compiler_params=pltpu.CompilerParams(
            dimension_semantics=("parallel",)),
    )(x_cl, w_f, b_f)

    return jnp.transpose(y_cl, (0, 3, 1, 2))                     # (N, C_out, T_out, V)


def reference(x, weight, bias, bn_params, *, stride=1, dilation=1):
    """Pure-JAX replica of the PyTorch forward (Conv2d (K,1) + eval-mode BN)."""
    gamma, beta, mean, var = bn_params
    k = weight.shape[2]
    pad = (k + (k - 1) * (dilation - 1) - 1) // 2
    y = jax.lax.conv_general_dilated(
        x, weight[:, :, :, None],
        window_strides=(stride, 1),
        padding=((pad, pad), (0, 0)),
        rhs_dilation=(dilation, 1),
        dimension_numbers=('NCHW', 'OIHW', 'NCHW'),
        precision=jax.lax.Precision.HIGHEST)
    y = y + bias[None, :, None, None]
    scale = gamma * jax.lax.rsqrt(var + BN_EPS)
    shift = beta - mean * scale
    return y * scale[None, :, None, None] + shift[None, :, None, None]


def init_params(key, c_in, c_out, kernel_size):
    """Deterministic params: random conv weight/bias and non-trivial BN stats."""
    k1, k2, k3, k4, k5, k6 = jax.random.split(key, 6)
    w = jax.random.normal(k1, (c_out, c_in, kernel_size), jnp.float32) \
        * (2.0 / (c_in * kernel_size)) ** 0.5
    b = 0.1 * jax.random.normal(k2, (c_out,), jnp.float32)
    gamma = 1.0 + 0.1 * jax.random.normal(k3, (c_out,), jnp.float32)
    beta = 0.1 * jax.random.normal(k4, (c_out,), jnp.float32)
    mean = 0.1 * jax.random.normal(k5, (c_out,), jnp.float32)
    var = jnp.abs(1.0 + 0.1 * jax.random.normal(k6, (c_out,), jnp.float32))
    return w, b, (gamma, beta, mean, var)


if __name__ == "__main__":
    key = jax.random.PRNGKey(0)
    kx, kp = jax.random.split(key)

    N, C_in, C_out, T, V, K = 2, 16, 32, 16, 16, 5
    x = jax.random.normal(kx, (N, C_in, T, V), jnp.float32)
    w, b, bn = init_params(kp, C_in, C_out, K)

    # Config 1: stride-2 downsampling temporal conv.
    out = jax.block_until_ready(temporal_conv(x, w, b, bn, stride=2, dilation=1))
    ref = reference(x, w, b, bn, stride=2, dilation=1)
    assert out.shape == ref.shape, (out.shape, ref.shape)
    assert jnp.allclose(out, ref, atol=5e-3, rtol=5e-3), "mismatch vs reference (stride=2)"

    # Config 2: dilation-2, stride-1 ("same"-length) temporal conv.
    out2 = jax.block_until_ready(temporal_conv(x, w, b, bn, stride=1, dilation=2))
    ref2 = reference(x, w, b, bn, stride=1, dilation=2)
    assert out2.shape == ref2.shape, (out2.shape, ref2.shape)
    assert jnp.allclose(out2, ref2, atol=5e-3, rtol=5e-3), "mismatch vs reference (dilation=2)"

    print("KERNEL_OK")
</pallas_src>

<mosaic_0001>
module attributes {stable_mosaic.version = 11 : i64} {
  func.func @_temporal_conv_kernel(%arg0: i32, %arg1: memref<1x21x16x16xf32, #tpu.memory_space<vmem>>, %arg2: memref<5x16x32xf32, #tpu.memory_space<vmem>>, %arg3: memref<1x32xf32, #tpu.memory_space<vmem>>, %arg4: memref<1x8x16x32xf32, #tpu.memory_space<vmem>>) attributes {dimension_semantics = [#tpu.dimension_semantics<parallel>], iteration_bounds = array<i64: 2>, scalar_prefetch = 0 : i64, scratch_operands = 0 : i64, tpu.core_type = #tpu.core_type<tc>, window_params = [{transform_indices = @transform_0, window_bounds = array<i64: 1, 21, 16, 16>}, {pipeline_mode = #tpu.pipeline_mode<synchronous>, transform_indices = @transform_1, window_bounds = array<i64: 5, 16, 32>}, {pipeline_mode = #tpu.pipeline_mode<synchronous>, transform_indices = @transform_2, window_bounds = array<i64: 1, 32>}, {transform_indices = @transform_3, window_bounds = array<i64: 1, 8, 16, 32>}]} {
    %c0 = arith.constant 0 : index
    %c0_0 = arith.constant 0 : index
    %c0_1 = arith.constant 0 : index
    %c0_2 = arith.constant 0 : index
    %0 = vector.load %arg1[%c0, %c0_0, %c0_1, %c0_2] : memref<1x21x16x16xf32, #tpu.memory_space<vmem>>, vector<1x21x16x16xf32>
    %1 = vector.shape_cast %0 : vector<1x21x16x16xf32> to vector<21x16x16xf32>
    %cst = arith.constant 0.000000e+00 : f32
    %2 = vector.broadcast %cst : f32 to vector<128x32xf32>
    %3 = vector.extract_strided_slice %1 {offsets = [0, 0, 0], sizes = [16, 16, 16], strides = [1, 1, 1]} : vector<21x16x16xf32> to vector<16x16x16xf32>
    %4 = vector.shape_cast %3 : vector<16x16x16xf32> to vector<8x2x16x16xf32>
    %5 = vector.extract_strided_slice %4 {offsets = [0, 0, 0, 0], sizes = [8, 1, 16, 16], strides = [1, 1, 1, 1]} : vector<8x2x16x16xf32> to vector<8x1x16x16xf32>
    %6 = vector.shape_cast %5 : vector<8x1x16x16xf32> to vector<8x16x16xf32>
    %7 = vector.shape_cast %6 : vector<8x16x16xf32> to vector<128x16xf32>
    %c0_3 = arith.constant 0 : index
    %c0_4 = arith.constant 0 : index
    %c0_5 = arith.constant 0 : index
    %8 = vector.load %arg2[%c0_3, %c0_4, %c0_5] : memref<5x16x32xf32, #tpu.memory_space<vmem>>, vector<1x16x32xf32>
    %9 = vector.shape_cast %8 : vector<1x16x32xf32> to vector<16x32xf32>
    %cst_6 = arith.constant dense<0.000000e+00> : vector<128x32xf32>
    %10 = tpu.matmul %7, %9, %cst_6 {dimension_numbers = #tpu.dot_dimension_numbers<[1], [0], [0], [1], [0, 0, 1, 1], [], []>} : vector<128x16xf32>, vector<16x32xf32>, vector<128x32xf32> -> vector<128x32xf32>
    %11 = arith.addf %2, %10 : vector<128x32xf32>
    %12 = vector.extract_strided_slice %1 {offsets = [1, 0, 0], sizes = [16, 16, 16], strides = [1, 1, 1]} : vector<21x16x16xf32> to vector<16x16x16xf32>
    %13 = vector.shape_cast %12 : vector<16x16x16xf32> to vector<8x2x16x16xf32>
    %14 = vector.extract_strided_slice %13 {offsets = [0, 0, 0, 0], sizes = [8, 1, 16, 16], strides = [1, 1, 1, 1]} : vector<8x2x16x16xf32> to vector<8x1x16x16xf32>
    %15 = vector.shape_cast %14 : vector<8x1x16x16xf32> to vector<8x16x16xf32>
    %16 = vector.shape_cast %15 : vector<8x16x16xf32> to vector<128x16xf32>
    %c1 = arith.constant 1 : index
    %c0_7 = arith.constant 0 : index
    %c0_8 = arith.constant 0 : index
    %17 = vector.load %arg2[%c1, %c0_7, %c0_8] : memref<5x16x32xf32, #tpu.memory_space<vmem>>, vector<1x16x32xf32>
    %18 = vector.shape_cast %17 : vector<1x16x32xf32> to vector<16x32xf32>
    %cst_9 = arith.constant dense<0.000000e+00> : vector<128x32xf32>
    %19 = tpu.matmul %16, %18, %cst_9 {dimension_numbers = #tpu.dot_dimension_numbers<[1], [0], [0], [1], [0, 0, 1, 1], [], []>} : vector<128x16xf32>, vector<16x32xf32>, vector<128x32xf32> -> vector<128x32xf32>
    %20 = arith.addf %11, %19 : vector<128x32xf32>
    %21 = vector.extract_strided_slice %1 {offsets = [2, 0, 0], sizes = [16, 16, 16], strides = [1, 1, 1]} : vector<21x16x16xf32> to vector<16x16x16xf32>
    %22 = vector.shape_cast %21 : vector<16x16x16xf32> to vector<8x2x16x16xf32>
    %23 = vector.extract_strided_slice %22 {offsets = [0, 0, 0, 0], sizes = [8, 1, 16, 16], strides = [1, 1, 1, 1]} : vector<8x2x16x16xf32> to vector<8x1x16x16xf32>
    %24 = vector.shape_cast %23 : vector<8x1x16x16xf32> to vector<8x16x16xf32>
    %25 = vector.shape_cast %24 : vector<8x16x16xf32> to vector<128x16xf32>
    %c2 = arith.constant 2 : index
    %c0_10 = arith.constant 0 : index
    %c0_11 = arith.constant 0 : index
    %26 = vector.load %arg2[%c2, %c0_10, %c0_11] : memref<5x16x32xf32, #tpu.memory_space<vmem>>, vector<1x16x32xf32>
    %27 = vector.shape_cast %26 : vector<1x16x32xf32> to vector<16x32xf32>
    %cst_12 = arith.constant dense<0.000000e+00> : vector<128x32xf32>
    %28 = tpu.matmul %25, %27, %cst_12 {dimension_numbers = #tpu.dot_dimension_numbers<[1], [0], [0], [1], [0, 0, 1, 1], [], []>} : vector<128x16xf32>, vector<16x32xf32>, vector<128x32xf32> -> vector<128x32xf32>
    %29 = arith.addf %20, %28 : vector<128x32xf32>
    %30 = vector.extract_strided_slice %1 {offsets = [3, 0, 0], sizes = [16, 16, 16], strides = [1, 1, 1]} : vector<21x16x16xf32> to vector<16x16x16xf32>
    %31 = vector.shape_cast %30 : vector<16x16x16xf32> to vector<8x2x16x16xf32>
    %32 = vector.extract_strided_slice %31 {offsets = [0, 0, 0, 0], sizes = [8, 1, 16, 16], strides = [1, 1, 1, 1]} : vector<8x2x16x16xf32> to vector<8x1x16x16xf32>
    %33 = vector.shape_cast %32 : vector<8x1x16x16xf32> to vector<8x16x16xf32>
    %34 = vector.shape_cast %33 : vector<8x16x16xf32> to vector<128x16xf32>
    %c3 = arith.constant 3 : index
    %c0_13 = arith.constant 0 : index
    %c0_14 = arith.constant 0 : index
    %35 = vector.load %arg2[%c3, %c0_13, %c0_14] : memref<5x16x32xf32, #tpu.memory_space<vmem>>, vector<1x16x32xf32>
    %36 = vector.shape_cast %35 : vector<1x16x32xf32> to vector<16x32xf32>
    %cst_15 = arith.constant dense<0.000000e+00> : vector<128x32xf32>
    %37 = tpu.matmul %34, %36, %cst_15 {dimension_numbers = #tpu.dot_dimension_numbers<[1], [0], [0], [1], [0, 0, 1, 1], [], []>} : vector<128x16xf32>, vector<16x32xf32>, vector<128x32xf32> -> vector<128x32xf32>
    %38 = arith.addf %29, %37 : vector<128x32xf32>
    %39 = vector.extract_strided_slice %1 {offsets = [4, 0, 0], sizes = [16, 16, 16], strides = [1, 1, 1]} : vector<21x16x16xf32> to vector<16x16x16xf32>
    %40 = vector.shape_cast %39 : vector<16x16x16xf32> to vector<8x2x16x16xf32>
    %41 = vector.extract_strided_slice %40 {offsets = [0, 0, 0, 0], sizes = [8, 1, 16, 16], strides = [1, 1, 1, 1]} : vector<8x2x16x16xf32> to vector<8x1x16x16xf32>
    %42 = vector.shape_cast %41 : vector<8x1x16x16xf32> to vector<8x16x16xf32>
    %43 = vector.shape_cast %42 : vector<8x16x16xf32> to vector<128x16xf32>
    %c4 = arith.constant 4 : index
    %c0_16 = arith.constant 0 : index
    %c0_17 = arith.constant 0 : index
    %44 = vector.load %arg2[%c4, %c0_16, %c0_17] : memref<5x16x32xf32, #tpu.memory_space<vmem>>, vector<1x16x32xf32>
    %45 = vector.shape_cast %44 : vector<1x16x32xf32> to vector<16x32xf32>
    %cst_18 = arith.constant dense<0.000000e+00> : vector<128x32xf32>
    %46 = tpu.matmul %43, %45, %cst_18 {dimension_numbers = #tpu.dot_dimension_numbers<[1], [0], [0], [1], [0, 0, 1, 1], [], []>} : vector<128x16xf32>, vector<16x32xf32>, vector<128x32xf32> -> vector<128x32xf32>
    %47 = arith.addf %38, %46 : vector<128x32xf32>
    %c0_19 = arith.constant 0 : index
    %c0_20 = arith.constant 0 : index
    %48 = vector.load %arg3[%c0_19, %c0_20] : memref<1x32xf32, #tpu.memory_space<vmem>>, vector<1x32xf32>
    %49 = vector.broadcast %48 : vector<1x32xf32> to vector<128x32xf32>
    %50 = arith.addf %47, %49 : vector<128x32xf32>
    %51 = vector.shape_cast %50 : vector<128x32xf32> to vector<8x16x32xf32>
    %c0_21 = arith.constant 0 : index
    %c0_22 = arith.constant 0 : index
    %c0_23 = arith.constant 0 : index
    %c0_24 = arith.constant 0 : index
    %52 = vector.load %arg4[%c0_21, %c0_22, %c0_23, %c0_24] : memref<1x8x16x32xf32, #tpu.memory_space<vmem>>, vector<1x8x16x32xf32>
    %53 = vector.shape_cast %52 : vector<1x8x16x32xf32> to vector<8x16x32xf32>
    %54 = vector.shape_cast %51 : vector<8x16x32xf32> to vector<1x8x16x32xf32>
    tpu.vector_store %arg4[%c0_21, %c0_22, %c0_23, %c0_24], %54 {strides = array<i32>} : memref<1x8x16x32xf32, #tpu.memory_space<vmem>>, vector<1x8x16x32xf32>,
    return
  }
  func.func @transform_0(%arg0: i32) -> (i32, i32, i32, i32) {
    %c0_i32 = arith.constant 0 : i32
    %c0_i32_0 = arith.constant 0 : i32
    %c0_i32_1 = arith.constant 0 : i32
    %c0_i32_2 = arith.constant 0 : i32
    return %arg0, %c0_i32, %c0_i32_0, %c0_i32_1 : i32, i32, i32, i32
  }
  func.func @transform_1(%arg0: i32) -> (i32, i32, i32) {
    %c0_i32 = arith.constant 0 : i32
    %c0_i32_0 = arith.constant 0 : i32
    %c0_i32_1 = arith.constant 0 : i32
    %c0_i32_2 = arith.constant 0 : i32
    return %c0_i32, %c0_i32_0, %c0_i32_1 : i32, i32, i32
  }
  func.func @transform_2(%arg0: i32) -> (i32, i32) {
    %c0_i32 = arith.constant 0 : i32
    %c0_i32_0 = arith.constant 0 : i32
    %c0_i32_1 = arith.constant 0 : i32
    return %c0_i32, %c0_i32_0 : i32, i32
  }
  func.func @transform_3(%arg0: i32) -> (i32, i32, i32, i32) {
    %c0_i32 = arith.constant 0 : i32
    %c0_i32_0 = arith.constant 0 : i32
    %c0_i32_1 = arith.constant 0 : i32
    %c0_i32_2 = arith.constant 0 : i32
    return %arg0, %c0_i32, %c0_i32_0, %c0_i32_1 : i32, i32, i32, i32
  }
}

</mosaic_0001>

<llo_original>
// kernel: tpu_custom_call.1
$region0: #{tpu_custom_call.1}
  #allocation0 [shape = 'u32[]', space=smem, size = 0x4, offset = 0x4, fixed_abs, tag = 'smem constant byte address 0x4 - core index']
  #allocation1 [shape = 'u32[72,128]{1,0:T(1,128)}', space=vmem, size = 0x9000, scoped, tag = 'internal scratch']
  %s0 = inlined_call_operand.vmem [shape: f32[2,21,16,16], index: 0, kind: input, shape index: {}]
  %s1 = inlined_call_operand.vmem [shape: f32[5,16,32], index: 1, kind: input, shape index: {}]
  %s2 = inlined_call_operand.vmem [shape: f32[1,32], index: 2, kind: input, shape index: {}]
  %s3 = inlined_call_operand.hbm [shape: f32[2,8,16,32], index: 3, kind: output, shape index: {}]
  %s4 = sld [smem:[#allocation0]]
  $region45: #{tpu_custom_call.1} parent=0
    _
  %s6 = ssub.s32 1, %s4
  %s7 = scalar_select 0, %s6, %s4
  $region1: #{tpu_custom_call.1} parent=0
    #allocation2 [shape = 'u8[131072]{0}', space=vmem, size = 0x20000, scoped, tag = 'output window, operand 0']
    #allocation3 [shape = 's32[2]{0}', space=sflag, size = 0x8, scoped, tag = 'scoped memory for tpu_custom_call.1']
    %8 = vsyncpa [#allocation3], 0
    %s9 = scalar_lea.sflag [#allocation3], 1
    %10 = vsyncpa %s9, 0
    loop: start=0, step=1, limit=4
    $region2: #{tpu_custom_call.1} parent=1 // loop_pre_header
      _
    $region3: #{tpu_custom_call.1} parent=1 // loop_header
      %s12 = sphi 0, %s16
      %p13 = scmp.ge.s32.totalorder %s12, 4
      %s22 = sphi 0, %s24
      %s25 = sphi 0, %s22
      %s26 = sphi 0, %s25
      %s42 = sphi 0, %s26
      %s46 = sphi 0, %s46
      %s48 = sphi 0, %s46
      %s49 = sphi 0, %s48
      %s63 = sphi 0, %s49
      %s67 = sphi 0, %s67
      %s69 = sphi 0, %s67
      %s70 = sphi 0, %s69
      %s84 = sphi 0, %s70
      %s90 = sphi 0, %s92
      %s93 = sphi 0, %s90
      %s94 = sphi 0, %s93
      %s110 = sphi 0, %s94
    $region4: #{tpu_custom_call.1} parent=1 // loop_header_branch
      %15 = sbr.rel (%p13) target = $region8
    $region5: #{tpu_custom_call.1} parent=1 // loop_body
      %s17 = ssub.s32 %s12, 1
      %s18 = ssub.s32 %s12, 2
      %s19 = sadd.s32 %s12, 1
      %s20 = ssub.s32 %s12, %s19
      %p21 = scmp.eq.s32.totalorder %s20, 0
      %s23 = sadd.s32 %s22, 1
      %s24 = scalar_select %p21, %s22, %s23
      %p27 = pneg %p21
      %p28 = scmp.eq.s32.totalorder %s12, 1
      %p29 = por %p27, %p28
      %p30 = scmp.ne.s32.totalorder %s22, %s25
      %p31 = scmp.eq.s32.totalorder %s12, 0
      %p32 = por %p30, %p31
      %p33 = scmp.ne.s32.totalorder %s22, %s25
      %p34 = scmp.eq.s32.totalorder %s17, 1
      %p35 = por %p33, %p34
      %p36 = scmp.ne.s32.totalorder %s25, %s26
      %p37 = scmp.eq.s32.totalorder %s17, 0
      %p38 = por %p36, %p37
      %p39 = scmp.ne.s32.totalorder %s25, %s26
      %p40 = scmp.eq.s32.totalorder %s18, 1
      %p41 = por %p39, %p40
      %p43 = scmp.ne.s32.totalorder %s26, %s42
      %p44 = scmp.eq.s32.totalorder %s18, 0
      %p45 = por %p43, %p44
      %s47 = sadd.s32 %s46, 1
      %p50 = scmp.eq.s32.totalorder %s12, 1
      %p51 = scmp.ne.s32.totalorder %s46, %s48
      %p52 = scmp.eq.s32.totalorder %s12, 0
      %p53 = por %p51, %p52
      %p54 = scmp.ne.s32.totalorder %s46, %s48
      %p55 = scmp.eq.s32.totalorder %s17, 1
      %p56 = por %p54, %p55
      %p57 = scmp.ne.s32.totalorder %s48, %s49
      %p58 = scmp.eq.s32.totalorder %s17, 0
      %p59 = por %p57, %p58
      %p60 = scmp.ne.s32.totalorder %s48, %s49
      %p61 = scmp.eq.s32.totalorder %s18, 1
      %p62 = por %p60, %p61
      %p64 = scmp.ne.s32.totalorder %s49, %s63
      %p65 = scmp.eq.s32.totalorder %s18, 0
      %p66 = por %p64, %p65
      %s68 = sadd.s32 %s67, 1
      %p71 = scmp.eq.s32.totalorder %s12, 1
      %p72 = scmp.ne.s32.totalorder %s67, %s69
      %p73 = scmp.eq.s32.totalorder %s12, 0
      %p74 = por %p72, %p73
      %p75 = scmp.ne.s32.totalorder %s67, %s69
      %p76 = scmp.eq.s32.totalorder %s17, 1
      %p77 = por %p75, %p76
      %p78 = scmp.ne.s32.totalorder %s69, %s70
      %p79 = scmp.eq.s32.totalorder %s17, 0
      %p80 = por %p78, %p79
      %p81 = scmp.ne.s32.totalorder %s69, %s70
      %p82 = scmp.eq.s32.totalorder %s18, 1
      %p83 = por %p81, %p82
      %p85 = scmp.ne.s32.totalorder %s70, %s84
      %p86 = scmp.eq.s32.totalorder %s18, 0
      %p87 = por %p85, %p86
      %s88 = ssub.s32 %s12, %s19
      %p89 = scmp.eq.s32.totalorder %s88, 0
      %s91 = sadd.s32 %s90, 1
      %s92 = scalar_select %p89, %s90, %s91
      %p95 = pneg %p89
      %p96 = scmp.eq.s32.totalorder %s12, 1
      %p97 = por %p95, %p96
      %p98 = scmp.ne.s32.totalorder %s90, %s93
      %p99 = scmp.eq.s32.totalorder %s12, 0
      %p100 = por %p98, %p99
      %p101 = scmp.ne.s32.totalorder %s90, %s93
      %p102 = scmp.eq.s32.totalorder %s17, 1
      %p103 = por %p101, %p102
      %p104 = scmp.ne.s32.totalorder %s93, %s94
      %p105 = scmp.eq.s32.totalorder %s17, 0
      %p106 = por %p104, %p105
      %p107 = scmp.ne.s32.totalorder %s93, %s94
      %p108 = scmp.eq.s32.totalorder %s18, 1
      %p109 = por %p107, %p108
      %p111 = scmp.ne.s32.totalorder %s94, %s110
      %p112 = scmp.eq.s32.totalorder %s18, 0
      %p113 = por %p111, %p112
      %p114 = scmp.le.s32.totalorder 1, %s12
      %p115 = scmp.lt.s32.totalorder %s12, 3
      %p116 = pnand %p114, %p115
      %p117 = pneg %p116
      // Predicated region
      $region9: #{tpu_custom_call.1} parent=5 // pred_check
        _
      $region10: #{tpu_custom_call.1} parent=5 // pred_check_branch
        %119 = sbr.rel (%p116) target = $region12
      $region11: #{tpu_custom_call.1} parent=5 // pred_region
        %s120 = ssub.s32 %s12, 1
        // Predicated region
        $region13: #{tpu_custom_call.1} parent=11 // pred_check
          %p121 = pneg %p59
        $region14: #{tpu_custom_call.1} parent=11 // pred_check_branch
          %123 = sbr.rel (%p121) target = $region16
        $region15: #{tpu_custom_call.1} parent=11 // pred_region
          _
        $region16: #{tpu_custom_call.1} parent=11 // pred_fallthru
          _
        // Predicated region
        $region17: #{tpu_custom_call.1} parent=11 // pred_check
          %p124 = pneg %p80
        $region18: #{tpu_custom_call.1} parent=11 // pred_check_branch
          %126 = sbr.rel (%p124) target = $region20
        $region19: #{tpu_custom_call.1} parent=11 // pred_region
          _
        $region20: #{tpu_custom_call.1} parent=11 // pred_fallthru
          _
      $region12: #{tpu_custom_call.1} parent=5 // pred_fallthru
        _
      %p127 = scmp.lt.s32.totalorder %s12, 2
      // Predicated region
      $region21: #{tpu_custom_call.1} parent=5 // pred_check
        %p128 = pneg %p127
      $region22: #{tpu_custom_call.1} parent=5 // pred_check_branch
        %130 = sbr.rel (%p128) target = $region24
      $region23: #{tpu_custom_call.1} parent=5 // pred_region
        // Predicated region
        $region25: #{tpu_custom_call.1} parent=23 // pred_check
          %p131 = pneg %p32
        $region26: #{tpu_custom_call.1} parent=23 // pred_check_branch
          %133 = sbr.rel (%p131) target = $region28
        $region27: #{tpu_custom_call.1} parent=23 // pred_region
          %p134 = scmp.lt.s32.totalorder %s12, 1
          %s135 = scalar_select %p134, %s12, 1
          %s136 = smul.addr %s135, 42
          %s137 = smul.addr %s136, 8
          %s138 = scalar_lea.vmem %s0, %s137
        $region28: #{tpu_custom_call.1} parent=23 // pred_fallthru
          _
      $region24: #{tpu_custom_call.1} parent=5 // pred_fallthru
        _
      %p139 = scmp.le.s32.totalorder 1, %s12
      %p140 = scmp.lt.s32.totalorder %s12, 3
      %p141 = pnand %p139, %p140
      %p142 = pneg %p141
      // Predicated region
      $region29: #{tpu_custom_call.1} parent=5 // pred_check
        _
      $region30: #{tpu_custom_call.1} parent=5 // pred_check_branch
        %144 = sbr.rel (%p141) target = $region32
      $region31: #{tpu_custom_call.1} parent=5 // pred_region
        %s145 = ssub.s32 %s12, 1
        %p146 = scmp.lt.s32.totalorder %s17, 1
        %s147 = scalar_select %p146, %s17, 1
        %s148 = smul.addr %s147, 42
        %s149 = smul.addr %s148, 8
        %s150 = scalar_lea.vmem %s0, %s149
        %p151 = pneg %p38
        %p152 = pneg %p35
        %p153 = pneg %p59
        %p154 = pneg %p56
        %p155 = pneg %p80
        %p156 = pneg %p77
        %p157 = pneg %p106
        %p158 = pneg %p103
        %s159 = sand.u32 %s93, 1
        %s160 = scalar_lea.sflag [#allocation3], %s159
        %s161 = sand.u32 %s93, 1
        %s162 = smul.addr %s161, 128
        %s163 = scalar_lea.vmem [#allocation2], %s162
        %p164 = scmp.lt.s32.totalorder %s17, 1
        %s165 = scalar_select %p164, %s17, 1
        %s166 = smul.addr %s165, 42
        %s167 = smul.addr %s166, 8
        %s168 = scalar_lea.vmem %s0, %s167
        %v169 = vld [vmem:[%s168] sm:$0xff]
        %v170 = vld [vmem:[%s168 + $0x8] sm:$0xff]
        %v171 = vld [vmem:[%s168 + $0x10] sm:$0xff]
        %v172 = vld [vmem:[%s168 + $0x18] sm:$0xff]
        %v173 = vld [vmem:[%s168 + $0x20] sm:$0xff]
        %v174 = vld [vmem:[%s168 + $0x28] sm:$0xff]
        %v175 = vld [vmem:[%s168 + $0x30] sm:$0xff]
        %v176 = vld [vmem:[%s168 + $0x38] sm:$0xff]
        %v177 = vld [vmem:[%s168 + $0x40] sm:$0xff]
        %v178 = vld [vmem:[%s168 + $0x48] sm:$0xff]
        %v179 = vld [vmem:[%s168 + $0x50] sm:$0xff]
        %v180 = vld [vmem:[%s168 + $0x58] sm:$0xff]
        %v181 = vld [vmem:[%s168 + $0x60] sm:$0xff]
        %v182 = vld [vmem:[%s168 + $0x68] sm:$0xff]
        %v183 = vld [vmem:[%s168 + $0x70] sm:$0xff]
        %v184 = vld [vmem:[%s168 + $0x78] sm:$0xff]
        %v185 = vld [vmem:[%s168 + $0x80] sm:$0xff]
        %v186 = vld [vmem:[%s168 + $0x88] sm:$0xff]
        %v187 = vld [vmem:[%s168 + $0x90] sm:$0xff]
        %v188 = vld [vmem:[%s168 + $0x98] sm:$0xff]
        %v189 = vld [vmem:[%s168 + $0xa0] sm:$0xff]
        %v190 = vld [vmem:[%s168 + $0xa8] sm:$0xff]
        %v191 = vld [vmem:[%s168 + $0xb0] sm:$0xff]
        %v192 = vld [vmem:[%s168 + $0xb8] sm:$0xff]
        %v193 = vld [vmem:[%s168 + $0xc0] sm:$0xff]
        %v194 = vld [vmem:[%s168 + $0xc8] sm:$0xff]
        %v195 = vld [vmem:[%s168 + $0xd0] sm:$0xff]
        %v196 = vld [vmem:[%s168 + $0xd8] sm:$0xff]
        %v197 = vld [vmem:[%s168 + $0xe0] sm:$0xff]
        %v198 = vld [vmem:[%s168 + $0xe8] sm:$0xff]
        %v199 = vld [vmem:[%s168 + $0xf0] sm:$0xff]
        %v200 = vld [vmem:[%s168 + $0xf8] sm:$0xff]
        %v201 = vld [vmem:[%s168 + $0x100] sm:$0xff]
        %v202 = vld [vmem:[%s168 + $0x108] sm:$0xff]
        %v203 = vld [vmem:[%s168 + $0x110] sm:$0xff]
        %v204 = vld [vmem:[%s168 + $0x118] sm:$0xff]
        %v205 = vld [vmem:[%s168 + $0x120] sm:$0xff]
        %v206 = vld [vmem:[%s168 + $0x128] sm:$0xff]
        %v207 = vld [vmem:[%s1] sm:$0xff]
        %v208 = vld [vmem:[%s1 + $0x8] sm:$0xff]
        %s209 = scalar_lea.vmem %s1, 16
        %v210 = vld [vmem:[%s209] sm:$0xff]
        %v211 = vld [vmem:[%s209 + $0x8] sm:$0xff]
        %vm212 = vcmask 130048
        %v214 = vsel %vm212, %v171, 0
        %v217 = vsel %vm212, %v172, 0
        %v220 = vsel %vm212, %v175, 0
        %v223 = vsel %vm212, %v176, 0
        %v226 = vsel %vm212, %v179, 0
        %v229 = vsel %vm212, %v180, 0
        %v232 = vsel %vm212, %v183, 0
        %v235 = vsel %vm212, %v184, 0
        %v238 = vsel %vm212, %v187, 0
        %v241 = vsel %vm212, %v188, 0
        %v244 = vsel %vm212, %v191, 0
        %v247 = vsel %vm212, %v192, 0
        %v250 = vsel %vm212, %v195, 0
        %v253 = vsel %vm212, %v196, 0
        %v256 = vsel %vm212, %v199, 0
        %v259 = vsel %vm212, %v200, 0
        %261 = vmatpush.msra.mxu0 0.0
        %262 = vmatpush.msra.mxu0 0.0
        %263 = vmatpush.msra.mxu0 0.0
        %264 = vmatpush.msra.mxu0 0.0
        %265 = vmatpush.msra.mxu0 0.0
        %266 = vmatpush.msra.mxu0 0.0
        %267 = vmatpush.msra.mxu0 0.0
        %268 = vmatpush.msra.mxu0 0.0
        %269 = vmatpush.msra.mxu0 0.0
        %270 = vmatpush.msra.mxu0 0.0
        %271 = vmatpush.msra.mxu0 0.0
        %272 = vmatpush.msra.mxu0 0.0
        %273 = vmatpush.msra.mxu0 0.0
        %274 = vmatpush.msra.mxu0 0.0
        %275 = vmatpush.msra.mxu0 %v211
        %276 = vmatpush.msra.mxu0 %v210
        %277 = vmatmul.f32.gmra.mxu0 %v214
        %v278 = vpop.f32.mrf.mxu0
        %v279 = vadd.f32 0.0, %v278
        %280 = vmatmul.f32.gmra.mxu0 %v217
        %v281 = vpop.f32.mrf.mxu0
        %v282 = vadd.f32 0.0, %v281
        %283 = vmatmul.f32.gmra.mxu0 %v220
        %v284 = vpop.f32.mrf.mxu0
        %v285 = vadd.f32 0.0, %v284
        %286 = vmatmul.f32.gmra.mxu0 %v223
        %v287 = vpop.f32.mrf.mxu0
        %v288 = vadd.f32 0.0, %v287
        %289 = vmatmul.f32.gmra.mxu0 %v226
        %v290 = vpop.f32.mrf.mxu0
        %v291 = vadd.f32 0.0, %v290
        %292 = vmatmul.f32.gmra.mxu0 %v229
        %v293 = vpop.f32.mrf.mxu0
        %v294 = vadd.f32 0.0, %v293
        %295 = vmatmul.f32.gmra.mxu0 %v232
        %v296 = vpop.f32.mrf.mxu0
        %v297 = vadd.f32 0.0, %v296
        %298 = vmatmul.f32.gmra.mxu0 %v235
        %v299 = vpop.f32.mrf.mxu0
        %v300 = vadd.f32 0.0, %v299
        %301 = vmatmul.f32.gmra.mxu0 %v238
        %v302 = vpop.f32.mrf.mxu0
        %v303 = vadd.f32 0.0, %v302
        %304 = vmatmul.f32.gmra.mxu0 %v241
        %v305 = vpop.f32.mrf.mxu0
        %v306 = vadd.f32 0.0, %v305
        %307 = vmatmul.f32.gmra.mxu0 %v244
        %v308 = vpop.f32.mrf.mxu0
        %v309 = vadd.f32 0.0, %v308
        %310 = vmatmul.f32.gmra.mxu0 %v247
        %v311 = vpop.f32.mrf.mxu0
        %v312 = vadd.f32 0.0, %v311
        %313 = vmatmul.f32.gmra.mxu0 %v250
        %v314 = vpop.f32.mrf.mxu0
        %v315 = vadd.f32 0.0, %v314
        %316 = vmatmul.f32.gmra.mxu0 %v253
        %v317 = vpop.f32.mrf.mxu0
        %v318 = vadd.f32 0.0, %v317
        %319 = vmatmul.f32.gmra.mxu0 %v256
        %v320 = vpop.f32.mrf.mxu0
        %v321 = vadd.f32 0.0, %v320
        %322 = vmatmul.f32.gmra.mxu0 %v259
        %v323 = vpop.f32.mrf.mxu0
        %v324 = vadd.f32 0.0, %v323
        %325 = vdwg.mxu0
        %v327 = vsel %vm212, %v169, 0
        %v330 = vsel %vm212, %v170, 0
        %v333 = vsel %vm212, %v173, 0
        %v336 = vsel %vm212, %v174, 0
        %v339 = vsel %vm212, %v177, 0
        %v342 = vsel %vm212, %v178, 0
        %v345 = vsel %vm212, %v181, 0
        %v348 = vsel %vm212, %v182, 0
        %v351 = vsel %vm212, %v185, 0
        %v354 = vsel %vm212, %v186, 0
        %v357 = vsel %vm212, %v189, 0
        %v360 = vsel %vm212, %v190, 0
        %v363 = vsel %vm212, %v193, 0
        %v366 = vsel %vm212, %v194, 0
        %v369 = vsel %vm212, %v197, 0
        %v372 = vsel %vm212, %v198, 0
        %374 = vmatpush.msra.mxu0 0.0
        %375 = vmatpush.msra.mxu0 0.0
        %376 = vmatpush.msra.mxu0 0.0
        %377 = vmatpush.msra.mxu0 0.0
        %378 = vmatpush.msra.mxu0 0.0
        %379 = vmatpush.msra.mxu0 0.0
        %380 = vmatpush.msra.mxu0 0.0
        %381 = vmatpush.msra.mxu0 0.0
        %382 = vmatpush.msra.mxu0 0.0
        %383 = vmatpush.msra.mxu0 0.0
        %384 = vmatpush.msra.mxu0 0.0
        %385 = vmatpush.msra.mxu0 0.0
        %386 = vmatpush.msra.mxu0 0.0
        %387 = vmatpush.msra.mxu0 0.0
        %388 = vmatpush.msra.mxu0 %v208
        %389 = vmatpush.msra.mxu0 %v207
        %390 = vmatmul.f32.gmra.mxu0 %v327
        %v391 = vpop.f32.mrf.mxu0
        %v392 = vadd.f32 %v279, %v391
        %393 = vmatmul.f32.gmra.mxu0 %v330
        %v394 = vpop.f32.mrf.mxu0
        %v395 = vadd.f32 %v282, %v394
        %396 = vmatmul.f32.gmra.mxu0 %v333
        %v397 = vpop.f32.mrf.mxu0
        %v398 = vadd.f32 %v285, %v397
        %399 = vmatmul.f32.gmra.mxu0 %v336
        %v400 = vpop.f32.mrf.mxu0
        %v401 = vadd.f32 %v288, %v400
        %402 = vmatmul.f32.gmra.mxu0 %v339
        %v403 = vpop.f32.mrf.mxu0
        %v404 = vadd.f32 %v291, %v403
        %405 = vmatmul.f32.gmra.mxu0 %v342
        %v406 = vpop.f32.mrf.mxu0
        %v407 = vadd.f32 %v294, %v406
        %408 = vmatmul.f32.gmra.mxu0 %v345
        %v409 = vpop.f32.mrf.mxu0
        %v410 = vadd.f32 %v297, %v409
        %411 = vmatmul.f32.gmra.mxu0 %v348
        %v412 = vpop.f32.mrf.mxu0
        %v413 = vadd.f32 %v300, %v412
        %414 = vmatmul.f32.gmra.mxu0 %v351
        %v415 = vpop.f32.mrf.mxu0
        %v416 = vadd.f32 %v303, %v415
        %417 = vmatmul.f32.gmra.mxu0 %v354
        %v418 = vpop.f32.mrf.mxu0
        %v419 = vadd.f32 %v306, %v418
        %420 = vmatmul.f32.gmra.mxu0 %v357
        %v421 = vpop.f32.mrf.mxu0
        %v422 = vadd.f32 %v309, %v421
        %423 = vmatmul.f32.gmra.mxu0 %v360
        %v424 = vpop.f32.mrf.mxu0
        %v425 = vadd.f32 %v312, %v424
        %426 = vmatmul.f32.gmra.mxu0 %v363
        %v427 = vpop.f32.mrf.mxu0
        %v428 = vadd.f32 %v315, %v427
        %429 = vmatmul.f32.gmra.mxu0 %v366
        %v430 = vpop.f32.mrf.mxu0
        %v431 = vadd.f32 %v318, %v430
        %432 = vmatmul.f32.gmra.mxu0 %v369
        %v433 = vpop.f32.mrf.mxu0
        %v434 = vadd.f32 %v321, %v433
        %435 = vmatmul.f32.gmra.mxu0 %v372
        %v436 = vpop.f32.mrf.mxu0
        %v437 = vadd.f32 %v324, %v436
        %438 = vdwg.mxu0
        %s439 = scalar_lea.vmem %s1, 32
        %v440 = vld [vmem:[%s439] sm:$0xff]
        %v441 = vld [vmem:[%s439 + $0x8] sm:$0xff]
        %v443 = vsel %vm212, %v201, 0
        %v446 = vsel %vm212, %v202, 0
        %448 = vmatpush.msra.mxu0 0.0
        %449 = vmatpush.msra.mxu0 0.0
        %450 = vmatpush.msra.mxu0 0.0
        %451 = vmatpush.msra.mxu0 0.0
        %452 = vmatpush.msra.mxu0 0.0
        %453 = vmatpush.msra.mxu0 0.0
        %454 = vmatpush.msra.mxu0 0.0
        %455 = vmatpush.msra.mxu0 0.0
        %456 = vmatpush.msra.mxu0 0.0
        %457 = vmatpush.msra.mxu0 0.0
        %458 = vmatpush.msra.mxu0 0.0
        %459 = vmatpush.msra.mxu0 0.0
        %460 = vmatpush.msra.mxu0 0.0
        %461 = vmatpush.msra.mxu0 0.0
        %462 = vmatpush.msra.mxu0 %v441
        %463 = vmatpush.msra.mxu0 %v440
        %464 = vmatmul.f32.gmra.mxu0 %v333
        %v465 = vpop.f32.mrf.mxu0
        %v466 = vadd.f32 0.0, %v465
        %467 = vmatmul.f32.gmra.mxu0 %v336
        %v468 = vpop.f32.mrf.mxu0
        %v469 = vadd.f32 0.0, %v468
        %470 = vmatmul.f32.gmra.mxu0 %v339
        %v471 = vpop.f32.mrf.mxu0
        %v472 = vadd.f32 0.0, %v471
        %473 = vmatmul.f32.gmra.mxu0 %v342
        %v474 = vpop.f32.mrf.mxu0
        %v475 = vadd.f32 0.0, %v474
        %476 = vmatmul.f32.gmra.mxu0 %v345
        %v477 = vpop.f32.mrf.mxu0
        %v478 = vadd.f32 0.0, %v477
        %479 = vmatmul.f32.gmra.mxu0 %v348
        %v480 = vpop.f32.mrf.mxu0
        %v481 = vadd.f32 0.0, %v480
        %482 = vmatmul.f32.gmra.mxu0 %v351
        %v483 = vpop.f32.mrf.mxu0
        %v484 = vadd.f32 0.0, %v483
        %485 = vmatmul.f32.gmra.mxu0 %v354
        %v486 = vpop.f32.mrf.mxu0
        %v487 = vadd.f32 0.0, %v486
        %488 = vmatmul.f32.gmra.mxu0 %v357
        %v489 = vpop.f32.mrf.mxu0
        %v490 = vadd.f32 0.0, %v489
        %491 = vmatmul.f32.gmra.mxu0 %v360
        %v492 = vpop.f32.mrf.mxu0
        %v493 = vadd.f32 0.0, %v492
        %494 = vmatmul.f32.gmra.mxu0 %v363
        %v495 = vpop.f32.mrf.mxu0
        %v496 = vadd.f32 0.0, %v495
        %497 = vmatmul.f32.gmra.mxu0 %v366
        %v498 = vpop.f32.mrf.mxu0
        %v499 = vadd.f32 0.0, %v498
        %500 = vmatmul.f32.gmra.mxu0 %v369
        %v501 = vpop.f32.mrf.mxu0
        %v502 = vadd.f32 0.0, %v501
        %503 = vmatmul.f32.gmra.mxu0 %v372
        %v504 = vpop.f32.mrf.mxu0
        %v505 = vadd.f32 0.0, %v504
        %506 = vmatmul.f32.gmra.mxu0 %v443
        %v507 = vpop.f32.mrf.mxu0
        %v508 = vadd.f32 0.0, %v507
        %509 = vmatmul.f32.gmra.mxu0 %v446
        %v510 = vpop.f32.mrf.mxu0
        %v511 = vadd.f32 0.0, %v510
        %512 = vdwg.mxu0
        %v513 = vadd.f32 %v392, %v466
        %v514 = vadd.f32 %v395, %v469
        %v515 = vadd.f32 %v398, %v472
        %v516 = vadd.f32 %v401, %v475
        %v517 = vadd.f32 %v404, %v478
        %v518 = vadd.f32 %v407, %v481
        %v519 = vadd.f32 %v410, %v484
        %v520 = vadd.f32 %v413, %v487
        %v521 = vadd.f32 %v416, %v490
        %v522 = vadd.f32 %v419, %v493
        %v523 = vadd.f32 %v422, %v496
        %v524 = vadd.f32 %v425, %v499
        %v525 = vadd.f32 %v428, %v502
        %v526 = vadd.f32 %v431, %v505
        %v527 = vadd.f32 %v434, %v508
        %v528 = vadd.f32 %v437, %v511
        %s529 = scalar_lea.vmem %s1, 48
        %v530 = vld [vmem:[%s529] sm:$0xff]
        %v531 = vld [vmem:[%s529 + $0x8] sm:$0xff]
        %v533 = vsel %vm212, %v203, 0
        %v536 = vsel %vm212, %v204, 0
        %538 = vmatpush.msra.mxu0 0.0
        %539 = vmatpush.msra.mxu0 0.0
        %540 = vmatpush.msra.mxu0 0.0
        %541 = vmatpush.msra.mxu0 0.0
        %542 = vmatpush.msra.mxu0 0.0
        %543 = vmatpush.msra.mxu0 0.0
        %544 = vmatpush.msra.mxu0 0.0
        %545 = vmatpush.msra.mxu0 0.0
        %546 = vmatpush.msra.mxu0 0.0
        %547 = vmatpush.msra.mxu0 0.0
        %548 = vmatpush.msra.mxu0 0.0
        %549 = vmatpush.msra.mxu0 0.0
        %550 = vmatpush.msra.mxu0 0.0
        %551 = vmatpush.msra.mxu0 0.0
        %552 = vmatpush.msra.mxu0 %v531
        %553 = vmatpush.msra.mxu0 %v530
        %554 = vmatmul.f32.gmra.mxu0 %v220
        %v555 = vpop.f32.mrf.mxu0
        %v556 = vadd.f32 0.0, %v555
        %557 = vmatmul.f32.gmra.mxu0 %v223
        %v558 = vpop.f32.mrf.mxu0
        %v559 = vadd.f32 0.0, %v558
        %560 = vmatmul.f32.gmra.mxu0 %v226
        %v561 = vpop.f32.mrf.mxu0
        %v562 = vadd.f32 0.0, %v561
        %563 = vmatmul.f32.gmra.mxu0 %v229
        %v564 = vpop.f32.mrf.mxu0
        %v565 = vadd.f32 0.0, %v564
        %566 = vmatmul.f32.gmra.mxu0 %v232
        %v567 = vpop.f32.mrf.mxu0
        %v568 = vadd.f32 0.0, %v567
        %569 = vmatmul.f32.gmra.mxu0 %v235
        %v570 = vpop.f32.mrf.mxu0
        %v571 = vadd.f32 0.0, %v570
        %572 = vmatmul.f32.gmra.mxu0 %v238
        %v573 = vpop.f32.mrf.mxu0
        %v574 = vadd.f32 0.0, %v573
        %575 = vmatmul.f32.gmra.mxu0 %v241
        %v576 = vpop.f32.mrf.mxu0
        %v577 = vadd.f32 0.0, %v576
        %578 = vmatmul.f32.gmra.mxu0 %v244
        %v579 = vpop.f32.mrf.mxu0
        %v580 = vadd.f32 0.0, %v579
        %581 = vmatmul.f32.gmra.mxu0 %v247
        %v582 = vpop.f32.mrf.mxu0
        %v583 = vadd.f32 0.0, %v582
        %584 = vmatmul.f32.gmra.mxu0 %v250
        %v585 = vpop.f32.mrf.mxu0
        %v586 = vadd.f32 0.0, %v585
        %587 = vmatmul.f32.gmra.mxu0 %v253
        %v588 = vpop.f32.mrf.mxu0
        %v589 = vadd.f32 0.0, %v588
        %590 = vmatmul.f32.gmra.mxu0 %v256
        %v591 = vpop.f32.mrf.mxu0
        %v592 = vadd.f32 0.0, %v591
        %593 = vmatmul.f32.gmra.mxu0 %v259
        %v594 = vpop.f32.mrf.mxu0
        %v595 = vadd.f32 0.0, %v594
        %596 = vmatmul.f32.gmra.mxu0 %v533
        %v597 = vpop.f32.mrf.mxu0
        %v598 = vadd.f32 0.0, %v597
        %599 = vmatmul.f32.gmra.mxu0 %v536
        %v600 = vpop.f32.mrf.mxu0
        %v601 = vadd.f32 0.0, %v600
        %602 = vdwg.mxu0
        %v603 = vadd.f32 %v513, %v556
        %v604 = vadd.f32 %v514, %v559
        %v605 = vadd.f32 %v515, %v562
        %v606 = vadd.f32 %v516, %v565
        %v607 = vadd.f32 %v517, %v568
        %v608 = vadd.f32 %v518, %v571
        %v609 = vadd.f32 %v519, %v574
        %v610 = vadd.f32 %v520, %v577
        %v611 = vadd.f32 %v521, %v580
        %v612 = vadd.f32 %v522, %v583
        %v613 = vadd.f32 %v523, %v586
        %v614 = vadd.f32 %v524, %v589
        %v615 = vadd.f32 %v525, %v592
        %v616 = vadd.f32 %v526, %v595
        %v617 = vadd.f32 %v527, %v598
        %v618 = vadd.f32 %v528, %v601
        %s619 = scalar_lea.vmem %s1, 64
        %v620 = vld [vmem:[%s619] sm:$0xff]
        %v621 = vld [vmem:[%s619 + $0x8] sm:$0xff]
        %v623 = vsel %vm212, %v205, 0
        %v626 = vsel %vm212, %v206, 0
        %628 = vmatpush.msra.mxu0 0.0
        %629 = vmatpush.msra.mxu0 0.0
        %630 = vmatpush.msra.mxu0 0.0
        %631 = vmatpush.msra.mxu0 0.0
        %632 = vmatpush.msra.mxu0 0.0
        %633 = vmatpush.msra.mxu0 0.0
        %634 = vmatpush.msra.mxu0 0.0
        %635 = vmatpush.msra.mxu0 0.0
        %636 = vmatpush.msra.mxu0 0.0
        %637 = vmatpush.msra.mxu0 0.0
        %638 = vmatpush.msra.mxu0 0.0
        %639 = vmatpush.msra.mxu0 0.0
        %640 = vmatpush.msra.mxu0 0.0
        %641 = vmatpush.msra.mxu0 0.0
        %642 = vmatpush.msra.mxu0 %v621
        %643 = vmatpush.msra.mxu0 %v620
        %644 = vmatmul.f32.gmra.mxu0 %v339
        %v645 = vpop.f32.mrf.mxu0
        %v646 = vadd.f32 0.0, %v645
        %647 = vmatmul.f32.gmra.mxu0 %v342
        %v648 = vpop.f32.mrf.mxu0
        %v649 = vadd.f32 0.0, %v648
        %650 = vmatmul.f32.gmra.mxu0 %v345
        %v651 = vpop.f32.mrf.mxu0
        %v652 = vadd.f32 0.0, %v651
        %653 = vmatmul.f32.gmra.mxu0 %v348
        %v654 = vpop.f32.mrf.mxu0
        %v655 = vadd.f32 0.0, %v654
        %656 = vmatmul.f32.gmra.mxu0 %v351
        %v657 = vpop.f32.mrf.mxu0
        %v658 = vadd.f32 0.0, %v657
        %659 = vmatmul.f32.gmra.mxu0 %v354
        %v660 = vpop.f32.mrf.mxu0
        %v661 = vadd.f32 0.0, %v660
        %662 = vmatmul.f32.gmra.mxu0 %v357
        %v663 = vpop.f32.mrf.mxu0
        %v664 = vadd.f32 0.0, %v663
        %665 = vmatmul.f32.gmra.mxu0 %v360
        %v666 = vpop.f32.mrf.mxu0
        %v667 = vadd.f32 0.0, %v666
        %668 = vmatmul.f32.gmra.mxu0 %v363
        %v669 = vpop.f32.mrf.mxu0
        %v670 = vadd.f32 0.0, %v669
        %671 = vmatmul.f32.gmra.mxu0 %v366
        %v672 = vpop.f32.mrf.mxu0
        %v673 = vadd.f32 0.0, %v672
        %674 = vmatmul.f32.gmra.mxu0 %v369
        %v675 = vpop.f32.mrf.mxu0
        %v676 = vadd.f32 0.0, %v675
        %677 = vmatmul.f32.gmra.mxu0 %v372
        %v678 = vpop.f32.mrf.mxu0
        %v679 = vadd.f32 0.0, %v678
        %680 = vmatmul.f32.gmra.mxu0 %v443
        %v681 = vpop.f32.mrf.mxu0
        %v682 = vadd.f32 0.0, %v681
        %683 = vmatmul.f32.gmra.mxu0 %v446
        %v684 = vpop.f32.mrf.mxu0
        %v685 = vadd.f32 0.0, %v684
        %686 = vmatmul.f32.gmra.mxu0 %v623
        %v687 = vpop.f32.mrf.mxu0
        %v688 = vadd.f32 0.0, %v687
        %689 = vmatmul.f32.gmra.mxu0 %v626
        %v690 = vpop.f32.mrf.mxu0
        %v691 = vadd.f32 0.0, %v690
        %692 = vdwg.mxu0
        %v693 = vadd.f32 %v603, %v646
        %v694 = vadd.f32 %v604, %v649
        %v695 = vadd.f32 %v605, %v652
        %v696 = vadd.f32 %v606, %v655
        %v697 = vadd.f32 %v607, %v658
        %v698 = vadd.f32 %v608, %v661
        %v699 = vadd.f32 %v609, %v664
        %v700 = vadd.f32 %v610, %v667
        %v701 = vadd.f32 %v611, %v670
        %v702 = vadd.f32 %v612, %v673
        %v703 = vadd.f32 %v613, %v676
        %v704 = vadd.f32 %v614, %v679
        %v705 = vadd.f32 %v615, %v682
        %v706 = vadd.f32 %v616, %v685
        %v707 = vadd.f32 %v617, %v688
        %v708 = vadd.f32 %v618, %v691
        %v709 = vld [vmem:[%s2] sm:$0x1]
        %v711 = vperm.slane %v709, 0
        %v713 = vadd.f32 %v693, %v711
        %v714 = vadd.f32 %v694, %v711
        %v715 = vadd.f32 %v695, %v711
        %v716 = vadd.f32 %v696, %v711
        %v717 = vadd.f32 %v697, %v711
        %v718 = vadd.f32 %v698, %v711
        %v719 = vadd.f32 %v699, %v711
        %v720 = vadd.f32 %v700, %v711
        %v721 = vadd.f32 %v701, %v711
        %v722 = vadd.f32 %v702, %v711
        %v723 = vadd.f32 %v703, %v711
        %v724 = vadd.f32 %v704, %v711
        %v725 = vadd.f32 %v705, %v711
        %v726 = vadd.f32 %v706, %v711
        %v727 = vadd.f32 %v707, %v711
        %v728 = vadd.f32 %v708, %v711
        %vm729 = vcmask 261120
        %730 = vst.msk [vmem:[%s163] sm:$0xff] %vm729, %v713
        %731 = vst.msk [vmem:[%s163 + $0x8] sm:$0xff] %vm729, %v714
        %732 = vst.msk [vmem:[%s163 + $0x10] sm:$0xff] %vm729, %v715
        %733 = vst.msk [vmem:[%s163 + $0x18] sm:$0xff] %vm729, %v716
        %734 = vst.msk [vmem:[%s163 + $0x20] sm:$0xff] %vm729, %v717
        %735 = vst.msk [vmem:[%s163 + $0x28] sm:$0xff] %vm729, %v718
        %736 = vst.msk [vmem:[%s163 + $0x30] sm:$0xff] %vm729, %v719
        %737 = vst.msk [vmem:[%s163 + $0x38] sm:$0xff] %vm729, %v720
        %738 = vst.msk [vmem:[%s163 + $0x40] sm:$0xff] %vm729, %v721
        %739 = vst.msk [vmem:[%s163 + $0x48] sm:$0xff] %vm729, %v722
        %740 = vst.msk [vmem:[%s163 + $0x50] sm:$0xff] %vm729, %v723
        %741 = vst.msk [vmem:[%s163 + $0x58] sm:$0xff] %vm729, %v724
        %742 = vst.msk [vmem:[%s163 + $0x60] sm:$0xff] %vm729, %v725
        %743 = vst.msk [vmem:[%s163 + $0x68] sm:$0xff] %vm729, %v726
        %744 = vst.msk [vmem:[%s163 + $0x70] sm:$0xff] %vm729, %v727
        %745 = vst.msk [vmem:[%s163 + $0x78] sm:$0xff] %vm729, %v728
        %s746 = sand.u32 %s93, 1
        %s747 = scalar_lea.sflag [#allocation3], %s746
        %s748 = sand.u32 %s93, 1
        %s749 = smul.addr %s748, 128
        %s750 = scalar_lea.vmem [#allocation2], %s749
        // Predicated region
        $region33: #{tpu_custom_call.1} parent=31 // pred_check
          %p751 = pneg %p103
        $region34: #{tpu_custom_call.1} parent=31 // pred_check_branch
          %753 = sbr.rel (%p751) target = $region36
        $region35: #{tpu_custom_call.1} parent=31 // pred_region
          %755 = vsyncadd %s747, 0
          %s756 = smul.addr %s17, 16
          %s757 = smul.addr %s756, 8
          %s758 = scalar_lea.hbm %s3, %s757
          %s759 = sshll.u32 %s750, 4
          %s760 = int_to_ptr.vmem [resolvable:$true] %s759
          %s761 = sshll.u32 %s758, 4
          %s762 = int_to_ptr.hbm [resolvable:$true] %s761
          %767 = dma.vmem_to_hbm [thread:$0]  %s760, 2048, %s762, %s747, 128, 128, 8
        $region36: #{tpu_custom_call.1} parent=31 // pred_fallthru
          _
      $region32: #{tpu_custom_call.1} parent=5 // pred_fallthru
        _
      %p768 = scmp.le.s32.totalorder 2, %s12
      // Predicated region
      $region37: #{tpu_custom_call.1} parent=5 // pred_check
        %p769 = pneg %p768
      $region38: #{tpu_custom_call.1} parent=5 // pred_check_branch
        %771 = sbr.rel (%p769) target = $region40
      $region39: #{tpu_custom_call.1} parent=5 // pred_region
        %s772 = ssub.s32 %s12, 2
        // Predicated region
        $region41: #{tpu_custom_call.1} parent=39 // pred_check
          %p773 = pneg %p109
        $region42: #{tpu_custom_call.1} parent=39 // pred_check_branch
          %775 = sbr.rel (%p773) target = $region44
        $region43: #{tpu_custom_call.1} parent=39 // pred_region
          %s776 = sand.u32 %s94, 1
          %s777 = scalar_lea.sflag [#allocation3], %s776
          %s778 = sand.u32 %s94, 1
          %s779 = smul.addr %s778, 128
          %s780 = scalar_lea.vmem [#allocation2], %s779
          %782 = dma.done %s777, 2048
        $region44: #{tpu_custom_call.1} parent=39 // pred_fallthru
          _
      $region40: #{tpu_custom_call.1} parent=5 // pred_fallthru
        _
    $region6: #{tpu_custom_call.1} parent=1 // loop_footer
      %s16 = sadd.s32 1, %s12
    $region7: #{tpu_custom_call.1} parent=1 // loop_footer_branch
      %11 = sbr.rel target = $region3
    $region8: #{tpu_custom_call.1} parent=1 // loop_exit
      _
    %783 = vsyncpa [#allocation3], 1
    %s784 = scalar_lea.sflag [#allocation3], 1
    %785 = vsyncpa %s784, 1

</llo_original>
